<compile_context>
chip_gen: v7x
topology: tpu7x:2x2x1
jax: 0.10.0
libtpu: 0.0.40
codegen_flags: <defaults>
</compile_context>

<pallas_src>
import functools

import jax
import jax.numpy as jnp
from jax.experimental import pallas as pl
from jax.experimental.pallas import tpu as pltpu

NEG_PAD = -1e30  # bias fill for padded logit lanes: exp() underflows to 0.


def _round_up(x, m):
    return ((x + m - 1) // m) * m


# ----------------------------------------------------------------------------
# In-kernel GRU cell (PyTorch gate order [r | z | n], bhh_n inside the r-gate)
# ----------------------------------------------------------------------------

def _gru_cell(x, h, wihT, whhT, bih, bhh, H):
    gi = jnp.dot(x, wihT, preferred_element_type=jnp.float32) + bih
    gh = jnp.dot(h, whhT, preferred_element_type=jnp.float32) + bhh
    r = jax.nn.sigmoid(gi[:, 0:H] + gh[:, 0:H])
    z = jax.nn.sigmoid(gi[:, H:2 * H] + gh[:, H:2 * H])
    n = jnp.tanh(gi[:, 2 * H:3 * H] + r * gh[:, 2 * H:3 * H])
    return (1.0 - z) * n + z * h


# ----------------------------------------------------------------------------
# Fused encoder kernel: whole sequence in one pallas_call.
#   grid=(T,);  hidden state is the grid-resident hN output block.
# ----------------------------------------------------------------------------

def _encoder_kernel(n_layers, H, *args):
    x_ref = args[0]
    w = args[1:1 + 4 * n_layers]              # wihT, whhT, bih, bhh per layer
    out_ref = args[1 + 4 * n_layers]          # (1, B, H) block, streams over t
    hN_ref = args[2 + 4 * n_layers]           # (n_layers, B, H), resident

    t = pl.program_id(0)

    @pl.when(t == 0)
    def _():
        hN_ref[...] = jnp.zeros_like(hN_ref)

    inp = x_ref[0]
    for l in range(n_layers):                 # static unroll over layers
        h_new = _gru_cell(inp, hN_ref[l],
                          w[4 * l][...], w[4 * l + 1][...],
                          w[4 * l + 2][...], w[4 * l + 3][...], H)
        hN_ref[l] = h_new
        inp = h_new
    out_ref[0] = inp
    # TODO(synk): nn.GRU applies dropout between layers in training mode;
    # dropout=0.0 here so it is a no-op.


def run_gru_encoder(layer_params, seq_padded, n_layers, H, B_pad):
    T, _, I = seq_padded.shape
    w_inputs, w_specs = [], []
    for p in layer_params:
        for name in ("wihT", "whhT", "bih", "bhh"):
            arr = p[name]
            w_inputs.append(arr)
            # Constant block index -> weight DMA'd once, stays VMEM-resident.
            w_specs.append(pl.BlockSpec(arr.shape, lambda t: (0, 0)))

    grid_spec = pltpu.PrefetchScalarGridSpec(
        num_scalar_prefetch=0,
        grid=(T,),
        in_specs=[pl.BlockSpec((1, B_pad, I), lambda t: (t, 0, 0))] + w_specs,
        out_specs=[
            pl.BlockSpec((1, B_pad, H), lambda t: (t, 0, 0)),
            pl.BlockSpec((n_layers, B_pad, H), lambda t: (0, 0, 0)),
        ],
    )
    return pl.pallas_call(
        functools.partial(_encoder_kernel, n_layers, H),
        grid_spec=grid_spec,
        out_shape=(
            jax.ShapeDtypeStruct((T, B_pad, H), jnp.float32),
            jax.ShapeDtypeStruct((n_layers, B_pad, H), jnp.float32),
        ),
        compiler_params=pltpu.CompilerParams(dimension_semantics=("arbitrary",)),
    )(seq_padded, *w_inputs)


# ----------------------------------------------------------------------------
# Fused decoder kernel: GRU stack + fc_out + LogSoftmax + argmax + next-input
# selection, all in one pallas_call over grid=(max_len-1,).
# ----------------------------------------------------------------------------

def _decoder_kernel(n_layers, H, O_pad, tf_ref, *args):
    out_seq_ref = args[0]                       # (1, B, I) teacher-forced input @ t
    w = args[1:1 + 4 * n_layers]
    fc_wT_ref = args[1 + 4 * n_layers]          # (H, O_pad)
    fc_b_ref = args[2 + 4 * n_layers]           # (1, O_pad) (pad lanes = NEG_PAD)
    o_ref = args[3 + 4 * n_layers]              # (1, B, O_pad) block @ t
    x_sc = args[4 + 4 * n_layers]               # (B, I) current decoder input
    h_sc = args[5 + 4 * n_layers]               # (n_layers, B, H) hidden state

    i = pl.program_id(0)

    @pl.when(i == 0)
    def _():
        # dec_input = zero "token" feature vector; hidden = zeros (NOT enc_hidden,
        # faithful to the reference).
        x_sc[...] = jnp.zeros_like(x_sc)
        h_sc[...] = jnp.zeros_like(h_sc)

    inp = x_sc[...]
    for l in range(n_layers):                   # static unroll over layers
        h_new = _gru_cell(inp, h_sc[l],
                          w[4 * l][...], w[4 * l + 1][...],
                          w[4 * l + 2][...], w[4 * l + 3][...], H)
        h_sc[l] = h_new
        inp = h_new

    # fc_out + LogSoftmax(dim=1), lane-dense (O_pad = multiple of 128).
    logits = jnp.dot(inp, fc_wT_ref[...],
                     preferred_element_type=jnp.float32) + fc_b_ref[...]
    m = jnp.max(logits, axis=1, keepdims=True)
    s = logits - m
    lse = jnp.log(jnp.sum(jnp.exp(s), axis=1, keepdims=True))
    logp = s - lse
    o_ref[0] = logp

    # Next decoder input: teacher forcing vs greedy argmax index (first maximal
    # index, like torch .max(1)[1]), broadcast as a float feature vector.
    mx = jnp.max(logp, axis=1, keepdims=True)
    lane = jax.lax.broadcasted_iota(jnp.int32, logp.shape, 1).astype(jnp.float32)
    top1 = jnp.min(jnp.where(logp >= mx, lane, float(O_pad)),
                   axis=1, keepdims=True)                      # (B, 1) float index
    tf_f = (tf_ref[i] > 0).astype(jnp.float32)                 # scalar 0/1
    fed = out_seq_ref[0]                                       # output_seq[t]
    x_sc[...] = tf_f * fed + (1.0 - tf_f) * top1


def run_decoder(dec_params, fc_wT, fc_b, out_seq_padded, tf_flags,
                n_layers, H, B_pad, O_pad, input_dim):
    max_len = out_seq_padded.shape[0]
    steps = max_len - 1

    w_inputs, w_specs = [], []
    for p in dec_params:
        for name in ("wihT", "whhT", "bih", "bhh"):
            arr = p[name]
            w_inputs.append(arr)
            w_specs.append(pl.BlockSpec(arr.shape, lambda i, tf: (0, 0)))

    grid_spec = pltpu.PrefetchScalarGridSpec(
        num_scalar_prefetch=1,                 # tf_flags -> SMEM
        grid=(steps,),
        in_specs=[pl.BlockSpec((1, B_pad, input_dim), lambda i, tf: (i + 1, 0, 0))]
                 + w_specs
                 + [pl.BlockSpec(fc_wT.shape, lambda i, tf: (0, 0)),
                    pl.BlockSpec(fc_b.shape, lambda i, tf: (0, 0))],
        out_specs=pl.BlockSpec((1, B_pad, O_pad), lambda i, tf: (i, 0, 0)),
        scratch_shapes=[pltpu.VMEM((B_pad, input_dim), jnp.float32),
                        pltpu.VMEM((n_layers, B_pad, H), jnp.float32)],
    )
    return pl.pallas_call(
        functools.partial(_decoder_kernel, n_layers, H, O_pad),
        grid_spec=grid_spec,
        out_shape=jax.ShapeDtypeStruct((steps, B_pad, O_pad), jnp.float32),
        compiler_params=pltpu.CompilerParams(dimension_semantics=("arbitrary",)),
    )(tf_flags, out_seq_padded, *w_inputs, fc_wT, fc_b)


# ----------------------------------------------------------------------------
# Parameter init (deterministic, PyTorch-style U(-1/sqrt(H), 1/sqrt(H)))
# ----------------------------------------------------------------------------

def init_gru_params(key, input_dim, hidden_dim, n_layers):
    k = 1.0 / float(hidden_dim) ** 0.5
    params = []
    for l in range(n_layers):
        in_dim = input_dim if l == 0 else hidden_dim
        key, k1, k2, k3, k4 = jax.random.split(key, 5)
        wih = jax.random.uniform(k1, (3 * hidden_dim, in_dim), minval=-k, maxval=k)
        whh = jax.random.uniform(k2, (3 * hidden_dim, hidden_dim), minval=-k, maxval=k)
        bih = jax.random.uniform(k3, (3 * hidden_dim,), minval=-k, maxval=k)
        bhh = jax.random.uniform(k4, (3 * hidden_dim,), minval=-k, maxval=k)
        params.append(dict(
            wihT=wih.T.astype(jnp.float32),
            whhT=whh.T.astype(jnp.float32),
            bih=bih[None, :].astype(jnp.float32),
            bhh=bhh[None, :].astype(jnp.float32),
        ))
    return params, key


def init_seq2seq_params(key, input_dim, hidden_dim, output_dim, n_layers):
    enc, key = init_gru_params(key, input_dim, hidden_dim, n_layers)
    dec, key = init_gru_params(key, input_dim, output_dim, n_layers)
    o_pad = _round_up(output_dim, 128)
    k = 1.0 / float(hidden_dim) ** 0.5   # nn.Linear: 1/sqrt(in_features=hidden_dim)
    key, kw, kb = jax.random.split(key, 3)
    fc_w = jax.random.uniform(kw, (output_dim, hidden_dim), minval=-k, maxval=k)
    fc_b = jax.random.uniform(kb, (output_dim,), minval=-k, maxval=k)
    # Pad fc to a lane-dense 128-wide output slab; padded lanes get NEG_PAD bias
    # so they contribute 0 to the softmax sum and never win the argmax.
    fc_wT = jnp.zeros((hidden_dim, o_pad), jnp.float32).at[:, :output_dim].set(
        fc_w.T.astype(jnp.float32))
    fc_bp = jnp.full((1, o_pad), NEG_PAD, jnp.float32).at[0, :output_dim].set(
        fc_b.astype(jnp.float32))
    # NOTE: weights kept f32 for v5e compatibility; on v6e/v7x bf16 weight
    # storage would halve VMEM/DMA footprint with no structural change.
    return dict(encoder=enc, decoder=dec, fc_wT=fc_wT, fc_b=fc_bp)


# ----------------------------------------------------------------------------
# Seq2Seq forward (fully jittable: no host sync in the decoder loop)
# ----------------------------------------------------------------------------

def make_seq2seq_forward(input_dim, hidden_dim, output_dim, n_layers):
    assert hidden_dim == output_dim, (
        "As in the reference PyTorch forward, the zero hidden state (hidden_dim) "
        "is fed to the decoder GRU (hidden size = output_dim); they must match.")
    O_pad = _round_up(output_dim, 128)

    def forward(params, input_seq, output_seq, tf_key, teacher_forcing_ratio):
        enc_len, batch, _ = input_seq.shape
        max_len = output_seq.shape[0]
        B_pad = max(8, _round_up(batch, 8))
        pad_b = B_pad - batch

        in_p = jnp.pad(input_seq.astype(jnp.float32), ((0, 0), (0, pad_b), (0, 0)))
        out_p = jnp.pad(output_seq.astype(jnp.float32), ((0, 0), (0, pad_b), (0, 0)))

        # Encoder pass: one fused kernel.  Its outputs are unused, exactly like
        # the reference (dead compute); XLA may DCE this call entirely.
        _enc_out, _enc_hidden = run_gru_encoder(
            params["encoder"], in_p, n_layers, hidden_dim, B_pad)

        if max_len <= 1:
            return jnp.zeros((max_len, batch, output_dim), jnp.float32)

        # Device-side teacher-forcing decisions (replaces per-step host readback).
        tf_flags = (jax.random.uniform(tf_key, (max_len - 1,))
                    < teacher_forcing_ratio).astype(jnp.int32)

        dec = run_decoder(params["decoder"], params["fc_wT"], params["fc_b"],
                          out_p, tf_flags, n_layers, output_dim,
                          B_pad, O_pad, input_dim)
        dec = dec[:, :batch, :output_dim]
        zeros0 = jnp.zeros((1, batch, output_dim), jnp.float32)  # slot t=0 stays 0
        return jnp.concatenate([zeros0, dec], axis=0)

    return jax.jit(forward)


# ----------------------------------------------------------------------------
# Demo
# ----------------------------------------------------------------------------

if __name__ == "__main__":
    input_dim, hidden_dim, output_dim, n_layers, dropout = 8, 16, 16, 2, 0.0
    batch, enc_len, max_len = 4, 6, 5

    root = jax.random.PRNGKey(0)
    k_params, k_in, k_out, k_tf = jax.random.split(root, 4)

    params = init_seq2seq_params(k_params, input_dim, hidden_dim, output_dim, n_layers)

    input_seq = jax.random.normal(k_in, (enc_len, batch, input_dim), jnp.float32)
    output_seq = jax.random.normal(k_out, (max_len, batch, input_dim), jnp.float32)

    forward = make_seq2seq_forward(input_dim, hidden_dim, output_dim, n_layers)
    dec_outputs = forward(params, input_seq, output_seq, k_tf, 0.5)
    dec_outputs = jax.block_until_ready(dec_outputs)

    assert dec_outputs.shape == (max_len, batch, output_dim)
    assert bool(jnp.all(jnp.isfinite(dec_outputs)))
    # t=0 slot is untouched (zeros), as in the reference.
    assert bool(jnp.all(dec_outputs[0] == 0.0))
    # rows t>=1 are log-probabilities: each row sums (in prob space) to ~1
    probs = jnp.exp(dec_outputs[1:]).sum(axis=-1)
    assert bool(jnp.all(jnp.abs(probs - 1.0) < 1e-4))
    print("KERNEL_OK")
</pallas_src>

<mosaic_0001>
module attributes {stable_mosaic.version = 11 : i64} {
  func.func @_decoder_kernel(%arg0: i32, %arg1: memref<4xi32, #tpu.memory_space<smem>>, %arg2: memref<1x8x8xf32, #tpu.memory_space<vmem>>, %arg3: memref<8x48xf32, #tpu.memory_space<vmem>>, %arg4: memref<16x48xf32, #tpu.memory_space<vmem>>, %arg5: memref<1x48xf32, #tpu.memory_space<vmem>>, %arg6: memref<1x48xf32, #tpu.memory_space<vmem>>, %arg7: memref<16x48xf32, #tpu.memory_space<vmem>>, %arg8: memref<16x48xf32, #tpu.memory_space<vmem>>, %arg9: memref<1x48xf32, #tpu.memory_space<vmem>>, %arg10: memref<1x48xf32, #tpu.memory_space<vmem>>, %arg11: memref<16x128xf32, #tpu.memory_space<vmem>>, %arg12: memref<1x128xf32, #tpu.memory_space<vmem>>, %arg13: memref<1x8x128xf32, #tpu.memory_space<vmem>>, %arg14: memref<8x8xf32, #tpu.memory_space<vmem>>, %arg15: memref<2x8x16xf32, #tpu.memory_space<vmem>>) attributes {dimension_semantics = [#tpu.dimension_semantics<arbitrary>], iteration_bounds = array<i64: 4>, scalar_prefetch = 1 : i64, scratch_operands = 2 : i64, tpu.core_type = #tpu.core_type<tc>, window_params = [{transform_indices = @transform_0, window_bounds = array<i64: 1, 8, 8>}, {pipeline_mode = #tpu.pipeline_mode<synchronous>, transform_indices = @transform_1, window_bounds = array<i64: 8, 48>}, {pipeline_mode = #tpu.pipeline_mode<synchronous>, transform_indices = @transform_2, window_bounds = array<i64: 16, 48>}, {pipeline_mode = #tpu.pipeline_mode<synchronous>, transform_indices = @transform_3, window_bounds = array<i64: 1, 48>}, {pipeline_mode = #tpu.pipeline_mode<synchronous>, transform_indices = @transform_4, window_bounds = array<i64: 1, 48>}, {pipeline_mode = #tpu.pipeline_mode<synchronous>, transform_indices = @transform_5, window_bounds = array<i64: 16, 48>}, {pipeline_mode = #tpu.pipeline_mode<synchronous>, transform_indices = @transform_6, window_bounds = array<i64: 16, 48>}, {pipeline_mode = #tpu.pipeline_mode<synchronous>, transform_indices = @transform_7, window_bounds = array<i64: 1, 48>}, {pipeline_mode = #tpu.pipeline_mode<synchronous>, transform_indices = @transform_8, window_bounds = array<i64: 1, 48>}, {pipeline_mode = #tpu.pipeline_mode<synchronous>, transform_indices = @transform_9, window_bounds = array<i64: 16, 128>}, {pipeline_mode = #tpu.pipeline_mode<synchronous>, transform_indices = @transform_10, window_bounds = array<i64: 1, 128>}, {transform_indices = @transform_11, window_bounds = array<i64: 1, 8, 128>}]} {
    %c0_i32 = arith.constant 0 : i32
    %0 = arith.cmpi eq, %arg0, %c0_i32 : i32
    %1 = arith.extui %0 : i1 to i32
    %c0_i32_0 = arith.constant 0 : i32
    %2 = arith.cmpi ne, %1, %c0_i32_0 : i32
    scf.if %2 {
      %cst_58 = arith.constant 0.000000e+00 : f32
      %129 = vector.broadcast %cst_58 : f32 to vector<8x8xf32>
      %c0_59 = arith.constant 0 : index
      %c0_60 = arith.constant 0 : index
      %130 = vector.load %arg14[%c0_59, %c0_60] : memref<8x8xf32, #tpu.memory_space<vmem>>, vector<8x8xf32>
      tpu.vector_store %arg14[%c0_59, %c0_60], %129 {strides = array<i32>} : memref<8x8xf32, #tpu.memory_space<vmem>>, vector<8x8xf32>,
      %cst_61 = arith.constant 0.000000e+00 : f32
      %131 = vector.broadcast %cst_61 : f32 to vector<2x8x16xf32>
      %c0_62 = arith.constant 0 : index
      %c0_63 = arith.constant 0 : index
      %c0_64 = arith.constant 0 : index
      %132 = vector.load %arg15[%c0_62, %c0_63, %c0_64] : memref<2x8x16xf32, #tpu.memory_space<vmem>>, vector<2x8x16xf32>
      tpu.vector_store %arg15[%c0_62, %c0_63, %c0_64], %131 {strides = array<i32>} : memref<2x8x16xf32, #tpu.memory_space<vmem>>, vector<2x8x16xf32>,
    } else {
    }
    %c0 = arith.constant 0 : index
    %c0_1 = arith.constant 0 : index
    %3 = vector.load %arg14[%c0, %c0_1] : memref<8x8xf32, #tpu.memory_space<vmem>>, vector<8x8xf32>
    %c0_2 = arith.constant 0 : index
    %c0_3 = arith.constant 0 : index
    %c0_4 = arith.constant 0 : index
    %4 = vector.load %arg15[%c0_2, %c0_3, %c0_4] : memref<2x8x16xf32, #tpu.memory_space<vmem>>, vector<1x8x16xf32>
    %5 = vector.shape_cast %4 : vector<1x8x16xf32> to vector<8x16xf32>
    %c0_5 = arith.constant 0 : index
    %c0_6 = arith.constant 0 : index
    %6 = vector.load %arg3[%c0_5, %c0_6] : memref<8x48xf32, #tpu.memory_space<vmem>>, vector<8x48xf32>
    %c0_7 = arith.constant 0 : index
    %c0_8 = arith.constant 0 : index
    %7 = vector.load %arg4[%c0_7, %c0_8] : memref<16x48xf32, #tpu.memory_space<vmem>>, vector<16x48xf32>
    %c0_9 = arith.constant 0 : index
    %c0_10 = arith.constant 0 : index
    %8 = vector.load %arg5[%c0_9, %c0_10] : memref<1x48xf32, #tpu.memory_space<vmem>>, vector<1x48xf32>
    %c0_11 = arith.constant 0 : index
    %c0_12 = arith.constant 0 : index
    %9 = vector.load %arg6[%c0_11, %c0_12] : memref<1x48xf32, #tpu.memory_space<vmem>>, vector<1x48xf32>
    %cst = arith.constant dense<0.000000e+00> : vector<8x48xf32>
    %10 = tpu.matmul %3, %6, %cst {dimension_numbers = #tpu.dot_dimension_numbers<[1], [0], [0], [1], [0, 0, 1, 1], [], []>} : vector<8x8xf32>, vector<8x48xf32>, vector<8x48xf32> -> vector<8x48xf32>
    %11 = vector.broadcast %8 : vector<1x48xf32> to vector<8x48xf32>
    %12 = arith.addf %10, %11 : vector<8x48xf32>
    %cst_13 = arith.constant dense<0.000000e+00> : vector<8x48xf32>
    %13 = tpu.matmul %5, %7, %cst_13 {dimension_numbers = #tpu.dot_dimension_numbers<[1], [0], [0], [1], [0, 0, 1, 1], [], []>} : vector<8x16xf32>, vector<16x48xf32>, vector<8x48xf32> -> vector<8x48xf32>
    %14 = vector.broadcast %9 : vector<1x48xf32> to vector<8x48xf32>
    %15 = arith.addf %13, %14 : vector<8x48xf32>
    %16 = vector.extract_strided_slice %12 {offsets = [0, 0], sizes = [8, 16], strides = [1, 1]} : vector<8x48xf32> to vector<8x16xf32>
    %17 = vector.extract_strided_slice %15 {offsets = [0, 0], sizes = [8, 16], strides = [1, 1]} : vector<8x48xf32> to vector<8x16xf32>
    %18 = arith.addf %16, %17 : vector<8x16xf32>
    %19 = arith.negf %18 : vector<8x16xf32>
    %20 = math.exp %19 : vector<8x16xf32>
    %cst_14 = arith.constant 1.000000e+00 : f32
    %21 = vector.broadcast %cst_14 : f32 to vector<8x16xf32>
    %22 = arith.addf %21, %20 : vector<8x16xf32>
    %23 = arith.divf %21, %22 : vector<8x16xf32>
    %24 = vector.extract_strided_slice %12 {offsets = [0, 16], sizes = [8, 16], strides = [1, 1]} : vector<8x48xf32> to vector<8x16xf32>
    %25 = vector.extract_strided_slice %15 {offsets = [0, 16], sizes = [8, 16], strides = [1, 1]} : vector<8x48xf32> to vector<8x16xf32>
    %26 = arith.addf %24, %25 : vector<8x16xf32>
    %27 = arith.negf %26 : vector<8x16xf32>
    %28 = math.exp %27 : vector<8x16xf32>
    %cst_15 = arith.constant 1.000000e+00 : f32
    %29 = vector.broadcast %cst_15 : f32 to vector<8x16xf32>
    %30 = arith.addf %29, %28 : vector<8x16xf32>
    %31 = arith.divf %29, %30 : vector<8x16xf32>
    %32 = vector.extract_strided_slice %12 {offsets = [0, 32], sizes = [8, 16], strides = [1, 1]} : vector<8x48xf32> to vector<8x16xf32>
    %33 = vector.extract_strided_slice %15 {offsets = [0, 32], sizes = [8, 16], strides = [1, 1]} : vector<8x48xf32> to vector<8x16xf32>
    %34 = arith.mulf %23, %33 : vector<8x16xf32>
    %35 = arith.addf %32, %34 : vector<8x16xf32>
    %36 = math.tanh %35 : vector<8x16xf32>
    %cst_16 = arith.constant 1.000000e+00 : f32
    %37 = vector.broadcast %cst_16 : f32 to vector<8x16xf32>
    %38 = arith.subf %37, %31 : vector<8x16xf32>
    %39 = arith.mulf %38, %36 : vector<8x16xf32>
    %40 = arith.mulf %31, %5 : vector<8x16xf32>
    %41 = arith.addf %39, %40 : vector<8x16xf32>
    %c0_17 = arith.constant 0 : index
    %c0_18 = arith.constant 0 : index
    %c0_19 = arith.constant 0 : index
    %42 = vector.load %arg15[%c0_17, %c0_18, %c0_19] : memref<2x8x16xf32, #tpu.memory_space<vmem>>, vector<1x8x16xf32>
    %43 = vector.shape_cast %42 : vector<1x8x16xf32> to vector<8x16xf32>
    %44 = vector.shape_cast %41 : vector<8x16xf32> to vector<1x8x16xf32>
    tpu.vector_store %arg15[%c0_17, %c0_18, %c0_19], %44 {strides = array<i32>} : memref<2x8x16xf32, #tpu.memory_space<vmem>>, vector<1x8x16xf32>,
    %c1 = arith.constant 1 : index
    %c0_20 = arith.constant 0 : index
    %c0_21 = arith.constant 0 : index
    %45 = vector.load %arg15[%c1, %c0_20, %c0_21] : memref<2x8x16xf32, #tpu.memory_space<vmem>>, vector<1x8x16xf32>
    %46 = vector.shape_cast %45 : vector<1x8x16xf32> to vector<8x16xf32>
    %c0_22 = arith.constant 0 : index
    %c0_23 = arith.constant 0 : index
    %47 = vector.load %arg7[%c0_22, %c0_23] : memref<16x48xf32, #tpu.memory_space<vmem>>, vector<16x48xf32>
    %c0_24 = arith.constant 0 : index
    %c0_25 = arith.constant 0 : index
    %48 = vector.load %arg8[%c0_24, %c0_25] : memref<16x48xf32, #tpu.memory_space<vmem>>, vector<16x48xf32>
    %c0_26 = arith.constant 0 : index
    %c0_27 = arith.constant 0 : index
    %49 = vector.load %arg9[%c0_26, %c0_27] : memref<1x48xf32, #tpu.memory_space<vmem>>, vector<1x48xf32>
    %c0_28 = arith.constant 0 : index
    %c0_29 = arith.constant 0 : index
    %50 = vector.load %arg10[%c0_28, %c0_29] : memref<1x48xf32, #tpu.memory_space<vmem>>, vector<1x48xf32>
    %cst_30 = arith.constant dense<0.000000e+00> : vector<8x48xf32>
    %51 = tpu.matmul %41, %47, %cst_30 {dimension_numbers = #tpu.dot_dimension_numbers<[1], [0], [0], [1], [0, 0, 1, 1], [], []>} : vector<8x16xf32>, vector<16x48xf32>, vector<8x48xf32> -> vector<8x48xf32>
    %52 = vector.broadcast %49 : vector<1x48xf32> to vector<8x48xf32>
    %53 = arith.addf %51, %52 : vector<8x48xf32>
    %cst_31 = arith.constant dense<0.000000e+00> : vector<8x48xf32>
    %54 = tpu.matmul %46, %48, %cst_31 {dimension_numbers = #tpu.dot_dimension_numbers<[1], [0], [0], [1], [0, 0, 1, 1], [], []>} : vector<8x16xf32>, vector<16x48xf32>, vector<8x48xf32> -> vector<8x48xf32>
    %55 = vector.broadcast %50 : vector<1x48xf32> to vector<8x48xf32>
    %56 = arith.addf %54, %55 : vector<8x48xf32>
    %57 = vector.extract_strided_slice %53 {offsets = [0, 0], sizes = [8, 16], strides = [1, 1]} : vector<8x48xf32> to vector<8x16xf32>
    %58 = vector.extract_strided_slice %56 {offsets = [0, 0], sizes = [8, 16], strides = [1, 1]} : vector<8x48xf32> to vector<8x16xf32>
    %59 = arith.addf %57, %58 : vector<8x16xf32>
    %60 = arith.negf %59 : vector<8x16xf32>
    %61 = math.exp %60 : vector<8x16xf32>
    %cst_32 = arith.constant 1.000000e+00 : f32
    %62 = vector.broadcast %cst_32 : f32 to vector<8x16xf32>
    %63 = arith.addf %62, %61 : vector<8x16xf32>
    %64 = arith.divf %62, %63 : vector<8x16xf32>
    %65 = vector.extract_strided_slice %53 {offsets = [0, 16], sizes = [8, 16], strides = [1, 1]} : vector<8x48xf32> to vector<8x16xf32>
    %66 = vector.extract_strided_slice %56 {offsets = [0, 16], sizes = [8, 16], strides = [1, 1]} : vector<8x48xf32> to vector<8x16xf32>
    %67 = arith.addf %65, %66 : vector<8x16xf32>
    %68 = arith.negf %67 : vector<8x16xf32>
    %69 = math.exp %68 : vector<8x16xf32>
    %cst_33 = arith.constant 1.000000e+00 : f32
    %70 = vector.broadcast %cst_33 : f32 to vector<8x16xf32>
    %71 = arith.addf %70, %69 : vector<8x16xf32>
    %72 = arith.divf %70, %71 : vector<8x16xf32>
    %73 = vector.extract_strided_slice %53 {offsets = [0, 32], sizes = [8, 16], strides = [1, 1]} : vector<8x48xf32> to vector<8x16xf32>
    %74 = vector.extract_strided_slice %56 {offsets = [0, 32], sizes = [8, 16], strides = [1, 1]} : vector<8x48xf32> to vector<8x16xf32>
    %75 = arith.mulf %64, %74 : vector<8x16xf32>
    %76 = arith.addf %73, %75 : vector<8x16xf32>
    %77 = math.tanh %76 : vector<8x16xf32>
    %cst_34 = arith.constant 1.000000e+00 : f32
    %78 = vector.broadcast %cst_34 : f32 to vector<8x16xf32>
    %79 = arith.subf %78, %72 : vector<8x16xf32>
    %80 = arith.mulf %79, %77 : vector<8x16xf32>
    %81 = arith.mulf %72, %46 : vector<8x16xf32>
    %82 = arith.addf %80, %81 : vector<8x16xf32>
    %c1_35 = arith.constant 1 : index
    %c0_36 = arith.constant 0 : index
    %c0_37 = arith.constant 0 : index
    %83 = vector.load %arg15[%c1_35, %c0_36, %c0_37] : memref<2x8x16xf32, #tpu.memory_space<vmem>>, vector<1x8x16xf32>
    %84 = vector.shape_cast %83 : vector<1x8x16xf32> to vector<8x16xf32>
    %85 = vector.shape_cast %82 : vector<8x16xf32> to vector<1x8x16xf32>
    tpu.vector_store %arg15[%c1_35, %c0_36, %c0_37], %85 {strides = array<i32>} : memref<2x8x16xf32, #tpu.memory_space<vmem>>, vector<1x8x16xf32>,
    %c0_38 = arith.constant 0 : index
    %c0_39 = arith.constant 0 : index
    %86 = vector.load %arg11[%c0_38, %c0_39] : memref<16x128xf32, #tpu.memory_space<vmem>>, vector<16x128xf32>
    %cst_40 = arith.constant dense<0.000000e+00> : vector<8x128xf32>
    %87 = tpu.matmul %82, %86, %cst_40 {dimension_numbers = #tpu.dot_dimension_numbers<[1], [0], [0], [1], [0, 0, 1, 1], [], []>} : vector<8x16xf32>, vector<16x128xf32>, vector<8x128xf32> -> vector<8x128xf32>
    %c0_41 = arith.constant 0 : index
    %c0_42 = arith.constant 0 : index
    %88 = vector.load %arg12[%c0_41, %c0_42] : memref<1x128xf32, #tpu.memory_space<vmem>>, vector<1x128xf32>
    %89 = vector.broadcast %88 : vector<1x128xf32> to vector<8x128xf32>
    %90 = arith.addf %87, %89 : vector<8x128xf32>
    %cst_43 = arith.constant dense<0xFF800000> : vector<8xf32>
    %91 = vector.multi_reduction <maximumf>, %90, %cst_43 [1] : vector<8x128xf32> to vector<8xf32>
    %92 = vector.shape_cast %91 : vector<8xf32> to vector<8x1xf32>
    %93 = vector.broadcast %92 : vector<8x1xf32> to vector<8x128xf32>
    %94 = arith.subf %90, %93 : vector<8x128xf32>
    %95 = math.exp %94 : vector<8x128xf32>
    %cst_44 = arith.constant dense<0.000000e+00> : vector<8xf32>
    %96 = vector.multi_reduction <add>, %95, %cst_44 [1] : vector<8x128xf32> to vector<8xf32>
    %97 = vector.shape_cast %96 : vector<8xf32> to vector<8x1xf32>
    %98 = math.log %97 : vector<8x1xf32>
    %99 = vector.broadcast %98 : vector<8x1xf32> to vector<8x128xf32>
    %100 = arith.subf %94, %99 : vector<8x128xf32>
    %c0_45 = arith.constant 0 : index
    %c0_46 = arith.constant 0 : index
    %c0_47 = arith.constant 0 : index
    %101 = vector.load %arg13[%c0_45, %c0_46, %c0_47] : memref<1x8x128xf32, #tpu.memory_space<vmem>>, vector<1x8x128xf32>
    %102 = vector.shape_cast %101 : vector<1x8x128xf32> to vector<8x128xf32>
    %103 = vector.shape_cast %100 : vector<8x128xf32> to vector<1x8x128xf32>
    tpu.vector_store %arg13[%c0_45, %c0_46, %c0_47], %103 {strides = array<i32>} : memref<1x8x128xf32, #tpu.memory_space<vmem>>, vector<1x8x128xf32>,
    %cst_48 = arith.constant dense<0xFF800000> : vector<8xf32>
    %104 = vector.multi_reduction <maximumf>, %100, %cst_48 [1] : vector<8x128xf32> to vector<8xf32>
    %105 = vector.shape_cast %104 : vector<8xf32> to vector<8x1xf32>
    %106 = tpu.iota {dimensions = array<i32: 1>} : vector<8x128xi32>
    %107 = arith.sitofp %106 : vector<8x128xi32> to vector<8x128xf32>
    %108 = vector.broadcast %105 : vector<8x1xf32> to vector<8x128xf32>
    %109 = arith.cmpf oge, %100, %108 : vector<8x128xf32>
    %cst_49 = arith.constant 1.280000e+02 : f32
    %110 = vector.broadcast %cst_49 : f32 to vector<8x128xf32>
    %111 = arith.select %109, %107, %110 : vector<8x128xi1>, vector<8x128xf32>
    %cst_50 = arith.constant dense<0x7F800000> : vector<8xf32>
    %112 = vector.multi_reduction <minimumf>, %111, %cst_50 [1] : vector<8x128xf32> to vector<8xf32>
    %113 = vector.shape_cast %112 : vector<8xf32> to vector<8x1xf32>
    %114 = arith.index_cast %arg0 : i32 to index
    %115 = memref.load %arg1[%114] : memref<4xi32, #tpu.memory_space<smem>>
    %c0_i32_51 = arith.constant 0 : i32
    %116 = arith.cmpi sgt, %115, %c0_i32_51 : i32
    %117 = arith.extui %116 : i1 to i32
    %118 = arith.sitofp %117 : i32 to f32
    %c0_52 = arith.constant 0 : index
    %c0_53 = arith.constant 0 : index
    %c0_54 = arith.constant 0 : index
    %119 = vector.load %arg2[%c0_52, %c0_53, %c0_54] : memref<1x8x8xf32, #tpu.memory_space<vmem>>, vector<1x8x8xf32>
    %120 = vector.shape_cast %119 : vector<1x8x8xf32> to vector<8x8xf32>
    %121 = vector.broadcast %118 : f32 to vector<8x8xf32>
    %122 = arith.mulf %121, %120 : vector<8x8xf32>
    %cst_55 = arith.constant 1.000000e+00 : f32
    %123 = arith.subf %cst_55, %118 : f32
    %124 = vector.broadcast %123 : f32 to vector<8x1xf32>
    %125 = arith.mulf %124, %113 : vector<8x1xf32>
    %126 = vector.broadcast %125 : vector<8x1xf32> to vector<8x8xf32>
    %127 = arith.addf %122, %126 : vector<8x8xf32>
    %c0_56 = arith.constant 0 : index
    %c0_57 = arith.constant 0 : index
    %128 = vector.load %arg14[%c0_56, %c0_57] : memref<8x8xf32, #tpu.memory_space<vmem>>, vector<8x8xf32>
    tpu.vector_store %arg14[%c0_56, %c0_57], %127 {strides = array<i32>} : memref<8x8xf32, #tpu.memory_space<vmem>>, vector<8x8xf32>,
    return
  }
  func.func @transform_0(%arg0: i32, %arg1: memref<4xi32, #tpu.memory_space<smem>>) -> (i32, i32, i32) {
    %c1_i32 = arith.constant 1 : i32
    %0 = arith.addi %arg0, %c1_i32 : i32
    %c0_i32 = arith.constant 0 : i32
    %c0_i32_0 = arith.constant 0 : i32
    %c0_i32_1 = arith.constant 0 : i32
    return %0, %c0_i32, %c0_i32_0 : i32, i32, i32
  }
  func.func @transform_1(%arg0: i32, %arg1: memref<4xi32, #tpu.memory_space<smem>>) -> (i32, i32) {
    %c0_i32 = arith.constant 0 : i32
    %c0_i32_0 = arith.constant 0 : i32
    %c0_i32_1 = arith.constant 0 : i32
    return %c0_i32, %c0_i32_0 : i32, i32
  }
  func.func @transform_2(%arg0: i32, %arg1: memref<4xi32, #tpu.memory_space<smem>>) -> (i32, i32) {
    %c0_i32 = arith.constant 0 : i32
    %c0_i32_0 = arith.constant 0 : i32
    %c0_i32_1 = arith.constant 0 : i32
    return %c0_i32, %c0_i32_0 : i32, i32
  }
  func.func @transform_3(%arg0: i32, %arg1: memref<4xi32, #tpu.memory_space<smem>>) -> (i32, i32) {
    %c0_i32 = arith.constant 0 : i32
    %c0_i32_0 = arith.constant 0 : i32
    %c0_i32_1 = arith.constant 0 : i32
    return %c0_i32, %c0_i32_0 : i32, i32
  }
  func.func @transform_4(%arg0: i32, %arg1: memref<4xi32, #tpu.memory_space<smem>>) -> (i32, i32) {
    %c0_i32 = arith.constant 0 : i32
    %c0_i32_0 = arith.constant 0 : i32
    %c0_i32_1 = arith.constant 0 : i32
    return %c0_i32, %c0_i32_0 : i32, i32
  }
  func.func @transform_5(%arg0: i32, %arg1: memref<4xi32, #tpu.memory_space<smem>>) -> (i32, i32) {
    %c0_i32 = arith.constant 0 : i32
    %c0_i32_0 = arith.constant 0 : i32
    %c0_i32_1 = arith.constant 0 : i32
    return %c0_i32, %c0_i32_0 : i32, i32
  }
  func.func @transform_6(%arg0: i32, %arg1: memref<4xi32, #tpu.memory_space<smem>>) -> (i32, i32) {
    %c0_i32 = arith.constant 0 : i32
    %c0_i32_0 = arith.constant 0 : i32
    %c0_i32_1 = arith.constant 0 : i32
    return %c0_i32, %c0_i32_0 : i32, i32
  }
  func.func @transform_7(%arg0: i32, %arg1: memref<4xi32, #tpu.memory_space<smem>>) -> (i32, i32) {
    %c0_i32 = arith.constant 0 : i32
    %c0_i32_0 = arith.constant 0 : i32
    %c0_i32_1 = arith.constant 0 : i32
    return %c0_i32, %c0_i32_0 : i32, i32
  }
  func.func @transform_8(%arg0: i32, %arg1: memref<4xi32, #tpu.memory_space<smem>>) -> (i32, i32) {
    %c0_i32 = arith.constant 0 : i32
    %c0_i32_0 = arith.constant 0 : i32
    %c0_i32_1 = arith.constant 0 : i32
    return %c0_i32, %c0_i32_0 : i32, i32
  }
  func.func @transform_9(%arg0: i32, %arg1: memref<4xi32, #tpu.memory_space<smem>>) -> (i32, i32) {
    %c0_i32 = arith.constant 0 : i32
    %c0_i32_0 = arith.constant 0 : i32
    %c0_i32_1 = arith.constant 0 : i32
    return %c0_i32, %c0_i32_0 : i32, i32
  }
  func.func @transform_10(%arg0: i32, %arg1: memref<4xi32, #tpu.memory_space<smem>>) -> (i32, i32) {
    %c0_i32 = arith.constant 0 : i32
    %c0_i32_0 = arith.constant 0 : i32
    %c0_i32_1 = arith.constant 0 : i32
    return %c0_i32, %c0_i32_0 : i32, i32
  }
  func.func @transform_11(%arg0: i32, %arg1: memref<4xi32, #tpu.memory_space<smem>>) -> (i32, i32, i32) {
    %c0_i32 = arith.constant 0 : i32
    %c0_i32_0 = arith.constant 0 : i32
    %c0_i32_1 = arith.constant 0 : i32
    return %arg0, %c0_i32, %c0_i32_0 : i32, i32, i32
  }
}

</mosaic_0001>

<llo_original>
// kernel: forward.1
$region0: #{forward.1}
  #allocation0 [shape = 'u32[]', space=smem, size = 0x4, offset = 0x4, fixed_abs, tag = 'smem constant byte address 0x4 - core index']
  #allocation1 [shape = 'u32[144,128]{1,0:T(1,128)}', space=vmem, size = 0x12000, scoped, tag = 'internal scratch']
  #allocation2 [shape = 'f32[8,8]{1,0:T(8,128)}', space=vmem, size = 0x1000, scoped, tag = 'scratch operand']
  #allocation3 [shape = 'f32[2,8,16]{2,1,0:T(8,128)}', space=vmem, size = 0x2000, scoped, tag = 'scratch operand']
  #allocation4 [shape = 's32[1]{0}', space=sflag, size = 0x4, scoped, tag = 'scoped memory for forward.1']
  #allocation5 [shape = 'u8[512]{0}', space=smem, size = 0x200, scoped, tag = 'prefetched SMEM operand 0']
  %s0 = inlined_call_operand.vmem [shape: s32[4], index: 0, kind: input, shape index: {}]
  %s1 = inlined_call_operand.vmem [shape: f32[5,8,8], index: 1, kind: input, shape index: {}]
  %s2 = inlined_call_operand.vmem [shape: f32[8,48], index: 2, kind: input, shape index: {}]
  %s3 = inlined_call_operand.vmem [shape: f32[16,48], index: 3, kind: input, shape index: {}]
  %s4 = inlined_call_operand.vmem [shape: f32[1,48], index: 4, kind: input, shape index: {}]
  %s5 = inlined_call_operand.vmem [shape: f32[1,48], index: 5, kind: input, shape index: {}]
  %s6 = inlined_call_operand.vmem [shape: f32[16,48], index: 6, kind: input, shape index: {}]
  %s7 = inlined_call_operand.vmem [shape: f32[16,48], index: 7, kind: input, shape index: {}]
  %s8 = inlined_call_operand.vmem [shape: f32[1,48], index: 8, kind: input, shape index: {}]
  %s9 = inlined_call_operand.vmem [shape: f32[1,48], index: 9, kind: input, shape index: {}]
  %s10 = inlined_call_operand.vmem [shape: f32[16,128], index: 10, kind: input, shape index: {}]
  %s11 = inlined_call_operand.vmem [shape: f32[1,128], index: 11, kind: input, shape index: {}]
  %s12 = inlined_call_operand.vmem [shape: f32[4,8,128], index: 12, kind: output, shape index: {}]
  %s13 = sld [smem:[#allocation0]]
  $region81: #{forward.1} parent=0
    _
  %s15 = ssub.s32 1, %s13
  %s16 = scalar_select 0, %s15, %s13
  %s17 = sshll.u32 %s0, 4
  %s18 = int_to_ptr.vmem [resolvable:$true] %s17
  %20 = dma.vmem_to_smem %s18, 16, [#allocation5], [#allocation4]
  %21 = dma.done [#allocation4], 16
  %22 = sfence
  loop: start=0, step=1, limit=6
  $region2: #{forward.1} parent=0 // loop_pre_header
    _
  $region3: #{forward.1} parent=0 // loop_header
    %s24 = sphi 0, %s28
    %p25 = scmp.ge.s32.totalorder %s24, 6
    %s36 = sphi 0, %s38
    %s39 = sphi 0, %s36
    %s40 = sphi 0, %s39
    %s56 = sphi 0, %s40
    %s60 = sphi 0, %s60
    %s62 = sphi 0, %s60
    %s63 = sphi 0, %s62
    %s77 = sphi 0, %s63
    %s81 = sphi 0, %s81
    %s83 = sphi 0, %s81
    %s84 = sphi 0, %s83
    %s98 = sphi 0, %s84
    %s102 = sphi 0, %s102
    %s104 = sphi 0, %s102
    %s105 = sphi 0, %s104
    %s119 = sphi 0, %s105
    %s123 = sphi 0, %s123
    %s125 = sphi 0, %s123
    %s126 = sphi 0, %s125
    %s140 = sphi 0, %s126
    %s144 = sphi 0, %s144
    %s146 = sphi 0, %s144
    %s147 = sphi 0, %s146
    %s161 = sphi 0, %s147
    %s165 = sphi 0, %s165
    %s167 = sphi 0, %s165
    %s168 = sphi 0, %s167
    %s182 = sphi 0, %s168
    %s186 = sphi 0, %s186
    %s188 = sphi 0, %s186
    %s189 = sphi 0, %s188
    %s203 = sphi 0, %s189
    %s207 = sphi 0, %s207
    %s209 = sphi 0, %s207
    %s210 = sphi 0, %s209
    %s224 = sphi 0, %s210
    %s228 = sphi 0, %s228
    %s230 = sphi 0, %s228
    %s231 = sphi 0, %s230
    %s245 = sphi 0, %s231
    %s249 = sphi 0, %s249
    %s251 = sphi 0, %s249
    %s252 = sphi 0, %s251
    %s266 = sphi 0, %s252
    %s272 = sphi 0, %s274
    %s275 = sphi 0, %s272
    %s276 = sphi 0, %s275
    %s292 = sphi 0, %s276
  $region4: #{forward.1} parent=0 // loop_header_branch
    %27 = sbr.rel (%p25) target = $region8
  $region5: #{forward.1} parent=0 // loop_body
    %s29 = ssub.s32 %s24, 1
    %s30 = ssub.s32 %s24, 2
    %s31 = sadd.s32 %s24, 1
    %s32 = sadd.s32 %s24, 1
    %s33 = sadd.s32 %s31, 1
    %s34 = ssub.s32 %s32, %s33
    %p35 = scmp.eq.s32.totalorder %s34, 0
    %s37 = sadd.s32 %s36, 1
    %s38 = scalar_select %p35, %s36, %s37
    %p41 = pneg %p35
    %p42 = scmp.eq.s32.totalorder %s24, 3
    %p43 = por %p41, %p42
    %p44 = scmp.ne.s32.totalorder %s36, %s39
    %p45 = scmp.eq.s32.totalorder %s24, 0
    %p46 = por %p44, %p45
    %p47 = scmp.ne.s32.totalorder %s36, %s39
    %p48 = scmp.eq.s32.totalorder %s29, 3
    %p49 = por %p47, %p48
    %p50 = scmp.ne.s32.totalorder %s39, %s40
    %p51 = scmp.eq.s32.totalorder %s29, 0
    %p52 = por %p50, %p51
    %p53 = scmp.ne.s32.totalorder %s39, %s40
    %p54 = scmp.eq.s32.totalorder %s30, 3
    %p55 = por %p53, %p54
    %p57 = scmp.ne.s32.totalorder %s40, %s56
    %p58 = scmp.eq.s32.totalorder %s30, 0
    %p59 = por %p57, %p58
    %s61 = sadd.s32 %s60, 1
    %p64 = scmp.eq.s32.totalorder %s24, 3
    %p65 = scmp.ne.s32.totalorder %s60, %s62
    %p66 = scmp.eq.s32.totalorder %s24, 0
    %p67 = por %p65, %p66
    %p68 = scmp.ne.s32.totalorder %s60, %s62
    %p69 = scmp.eq.s32.totalorder %s29, 3
    %p70 = por %p68, %p69
    %p71 = scmp.ne.s32.totalorder %s62, %s63
    %p72 = scmp.eq.s32.totalorder %s29, 0
    %p73 = por %p71, %p72
    %p74 = scmp.ne.s32.totalorder %s62, %s63
    %p75 = scmp.eq.s32.totalorder %s30, 3
    %p76 = por %p74, %p75
    %p78 = scmp.ne.s32.totalorder %s63, %s77
    %p79 = scmp.eq.s32.totalorder %s30, 0
    %p80 = por %p78, %p79
    %s82 = sadd.s32 %s81, 1
    %p85 = scmp.eq.s32.totalorder %s24, 3
    %p86 = scmp.ne.s32.totalorder %s81, %s83
    %p87 = scmp.eq.s32.totalorder %s24, 0
    %p88 = por %p86, %p87
    %p89 = scmp.ne.s32.totalorder %s81, %s83
    %p90 = scmp.eq.s32.totalorder %s29, 3
    %p91 = por %p89, %p90
    %p92 = scmp.ne.s32.totalorder %s83, %s84
    %p93 = scmp.eq.s32.totalorder %s29, 0
    %p94 = por %p92, %p93
    %p95 = scmp.ne.s32.totalorder %s83, %s84
    %p96 = scmp.eq.s32.totalorder %s30, 3
    %p97 = por %p95, %p96
    %p99 = scmp.ne.s32.totalorder %s84, %s98
    %p100 = scmp.eq.s32.totalorder %s30, 0
    %p101 = por %p99, %p100
    %s103 = sadd.s32 %s102, 1
    %p106 = scmp.eq.s32.totalorder %s24, 3
    %p107 = scmp.ne.s32.totalorder %s102, %s104
    %p108 = scmp.eq.s32.totalorder %s24, 0
    %p109 = por %p107, %p108
    %p110 = scmp.ne.s32.totalorder %s102, %s104
    %p111 = scmp.eq.s32.totalorder %s29, 3
    %p112 = por %p110, %p111
    %p113 = scmp.ne.s32.totalorder %s104, %s105
    %p114 = scmp.eq.s32.totalorder %s29, 0
    %p115 = por %p113, %p114
    %p116 = scmp.ne.s32.totalorder %s104, %s105
    %p117 = scmp.eq.s32.totalorder %s30, 3
    %p118 = por %p116, %p117
    %p120 = scmp.ne.s32.totalorder %s105, %s119
    %p121 = scmp.eq.s32.totalorder %s30, 0
    %p122 = por %p120, %p121
    %s124 = sadd.s32 %s123, 1
    %p127 = scmp.eq.s32.totalorder %s24, 3
    %p128 = scmp.ne.s32.totalorder %s123, %s125
    %p129 = scmp.eq.s32.totalorder %s24, 0
    %p130 = por %p128, %p129
    %p131 = scmp.ne.s32.totalorder %s123, %s125
    %p132 = scmp.eq.s32.totalorder %s29, 3
    %p133 = por %p131, %p132
    %p134 = scmp.ne.s32.totalorder %s125, %s126
    %p135 = scmp.eq.s32.totalorder %s29, 0
    %p136 = por %p134, %p135
    %p137 = scmp.ne.s32.totalorder %s125, %s126
    %p138 = scmp.eq.s32.totalorder %s30, 3
    %p139 = por %p137, %p138
    %p141 = scmp.ne.s32.totalorder %s126, %s140
    %p142 = scmp.eq.s32.totalorder %s30, 0
    %p143 = por %p141, %p142
    %s145 = sadd.s32 %s144, 1
    %p148 = scmp.eq.s32.totalorder %s24, 3
    %p149 = scmp.ne.s32.totalorder %s144, %s146
    %p150 = scmp.eq.s32.totalorder %s24, 0
    %p151 = por %p149, %p150
    %p152 = scmp.ne.s32.totalorder %s144, %s146
    %p153 = scmp.eq.s32.totalorder %s29, 3
    %p154 = por %p152, %p153
    %p155 = scmp.ne.s32.totalorder %s146, %s147
    %p156 = scmp.eq.s32.totalorder %s29, 0
    %p157 = por %p155, %p156
    %p158 = scmp.ne.s32.totalorder %s146, %s147
    %p159 = scmp.eq.s32.totalorder %s30, 3
    %p160 = por %p158, %p159
    %p162 = scmp.ne.s32.totalorder %s147, %s161
    %p163 = scmp.eq.s32.totalorder %s30, 0
    %p164 = por %p162, %p163
    %s166 = sadd.s32 %s165, 1
    %p169 = scmp.eq.s32.totalorder %s24, 3
    %p170 = scmp.ne.s32.totalorder %s165, %s167
    %p171 = scmp.eq.s32.totalorder %s24, 0
    %p172 = por %p170, %p171
    %p173 = scmp.ne.s32.totalorder %s165, %s167
    %p174 = scmp.eq.s32.totalorder %s29, 3
    %p175 = por %p173, %p174
    %p176 = scmp.ne.s32.totalorder %s167, %s168
    %p177 = scmp.eq.s32.totalorder %s29, 0
    %p178 = por %p176, %p177
    %p179 = scmp.ne.s32.totalorder %s167, %s168
    %p180 = scmp.eq.s32.totalorder %s30, 3
    %p181 = por %p179, %p180
    %p183 = scmp.ne.s32.totalorder %s168, %s182
    %p184 = scmp.eq.s32.totalorder %s30, 0
    %p185 = por %p183, %p184
    %s187 = sadd.s32 %s186, 1
    %p190 = scmp.eq.s32.totalorder %s24, 3
    %p191 = scmp.ne.s32.totalorder %s186, %s188
    %p192 = scmp.eq.s32.totalorder %s24, 0
    %p193 = por %p191, %p192
    %p194 = scmp.ne.s32.totalorder %s186, %s188
    %p195 = scmp.eq.s32.totalorder %s29, 3
    %p196 = por %p194, %p195
    %p197 = scmp.ne.s32.totalorder %s188, %s189
    %p198 = scmp.eq.s32.totalorder %s29, 0
    %p199 = por %p197, %p198
    %p200 = scmp.ne.s32.totalorder %s188, %s189
    %p201 = scmp.eq.s32.totalorder %s30, 3
    %p202 = por %p200, %p201
    %p204 = scmp.ne.s32.totalorder %s189, %s203
    %p205 = scmp.eq.s32.totalorder %s30, 0
    %p206 = por %p204, %p205
    %s208 = sadd.s32 %s207, 1
    %p211 = scmp.eq.s32.totalorder %s24, 3
    %p212 = scmp.ne.s32.totalorder %s207, %s209
    %p213 = scmp.eq.s32.totalorder %s24, 0
    %p214 = por %p212, %p213
    %p215 = scmp.ne.s32.totalorder %s207, %s209
    %p216 = scmp.eq.s32.totalorder %s29, 3
    %p217 = por %p215, %p216
    %p218 = scmp.ne.s32.totalorder %s209, %s210
    %p219 = scmp.eq.s32.totalorder %s29, 0
    %p220 = por %p218, %p219
    %p221 = scmp.ne.s32.totalorder %s209, %s210
    %p222 = scmp.eq.s32.totalorder %s30, 3
    %p223 = por %p221, %p222
    %p225 = scmp.ne.s32.totalorder %s210, %s224
    %p226 = scmp.eq.s32.totalorder %s30, 0
    %p227 = por %p225, %p226
    %s229 = sadd.s32 %s228, 1
    %p232 = scmp.eq.s32.totalorder %s24, 3
    %p233 = scmp.ne.s32.totalorder %s228, %s230
    %p234 = scmp.eq.s32.totalorder %s24, 0
    %p235 = por %p233, %p234
    %p236 = scmp.ne.s32.totalorder %s228, %s230
    %p237 = scmp.eq.s32.totalorder %s29, 3
    %p238 = por %p236, %p237
    %p239 = scmp.ne.s32.totalorder %s230, %s231
    %p240 = scmp.eq.s32.totalorder %s29, 0
    %p241 = por %p239, %p240
    %p242 = scmp.ne.s32.totalorder %s230, %s231
    %p243 = scmp.eq.s32.totalorder %s30, 3
    %p244 = por %p242, %p243
    %p246 = scmp.ne.s32.totalorder %s231, %s245
    %p247 = scmp.eq.s32.totalorder %s30, 0
    %p248 = por %p246, %p247
    %s250 = sadd.s32 %s249, 1
    %p253 = scmp.eq.s32.totalorder %s24, 3
    %p254 = scmp.ne.s32.totalorder %s249, %s251
    %p255 = scmp.eq.s32.totalorder %s24, 0
    %p256 = por %p254, %p255
    %p257 = scmp.ne.s32.totalorder %s249, %s251
    %p258 = scmp.eq.s32.totalorder %s29, 3
    %p259 = por %p257, %p258
    %p260 = scmp.ne.s32.totalorder %s251, %s252
    %p261 = scmp.eq.s32.totalorder %s29, 0
    %p262 = por %p260, %p261
    %p263 = scmp.ne.s32.totalorder %s251, %s252
    %p264 = scmp.eq.s32.totalorder %s30, 3
    %p265 = por %p263, %p264
    %p267 = scmp.ne.s32.totalorder %s252, %s266
    %p268 = scmp.eq.s32.totalorder %s30, 0
    %p269 = por %p267, %p268
    %s270 = ssub.s32 %s24, %s31
    %p271 = scmp.eq.s32.totalorder %s270, 0
    %s273 = sadd.s32 %s272, 1
    %s274 = scalar_select %p271, %s272, %s273
    %p277 = pneg %p271
    %p278 = scmp.eq.s32.totalorder %s24, 3
    %p279 = por %p277, %p278
    %p280 = scmp.ne.s32.totalorder %s272, %s275
    %p281 = scmp.eq.s32.totalorder %s24, 0
    %p282 = por %p280, %p281
    %p283 = scmp.ne.s32.totalorder %s272, %s275
    %p284 = scmp.eq.s32.totalorder %s29, 3
    %p285 = por %p283, %p284
    %p286 = scmp.ne.s32.totalorder %s275, %s276
    %p287 = scmp.eq.s32.totalorder %s29, 0
    %p288 = por %p286, %p287
    %p289 = scmp.ne.s32.totalorder %s275, %s276
    %p290 = scmp.eq.s32.totalorder %s30, 3
    %p291 = por %p289, %p290
    %p293 = scmp.ne.s32.totalorder %s276, %s292
    %p294 = scmp.eq.s32.totalorder %s30, 0
    %p295 = por %p293, %p294
    %p296 = scmp.le.s32.totalorder 1, %s24
    %p297 = scmp.lt.s32.totalorder %s24, 5
    %p298 = pnand %p296, %p297
    %p299 = pneg %p298
    // Predicated region
    $region9: #{forward.1} parent=5 // pred_check
      _
    $region10: #{forward.1} parent=5 // pred_check_branch
      %301 = sbr.rel (%p298) target = $region12
    $region11: #{forward.1} parent=5 // pred_region
      %s302 = ssub.s32 %s24, 1
      // Predicated region
      $region13: #{forward.1} parent=11 // pred_check
        %p303 = pneg %p73
      $region14: #{forward.1} parent=11 // pred_check_branch
        %305 = sbr.rel (%p303) target = $region16
      $region15: #{forward.1} parent=11 // pred_region
        _
      $region16: #{forward.1} parent=11 // pred_fallthru
        _
      // Predicated region
      $region17: #{forward.1} parent=11 // pred_check
        %p306 = pneg %p94
      $region18: #{forward.1} parent=11 // pred_check_branch
        %308 = sbr.rel (%p306) target = $region20
      $region19: #{forward.1} parent=11 // pred_region
        _
      $region20: #{forward.1} parent=11 // pred_fallthru
        _
      // Predicated region
      $region21: #{forward.1} parent=11 // pred_check
        %p309 = pneg %p115
      $region22: #{forward.1} parent=11 // pred_check_branch
        %311 = sbr.rel (%p309) target = $region24
      $region23: #{forward.1} parent=11 // pred_region
        _
      $region24: #{forward.1} parent=11 // pred_fallthru
        _
      // Predicated region
      $region25: #{forward.1} parent=11 // pred_check
        %p312 = pneg %p136
      $region26: #{forward.1} parent=11 // pred_check_branch
        %314 = sbr.rel (%p312) target = $region28
      $region27: #{forward.1} parent=11 // pred_region
        _
      $region28: #{forward.1} parent=11 // pred_fallthru
        _
      // Predicated region
      $region29: #{forward.1} parent=11 // pred_check
        %p315 = pneg %p157
      $region30: #{forward.1} parent=11 // pred_check_branch
        %317 = sbr.rel (%p315) target = $region32
      $region31: #{forward.1} parent=11 // pred_region
        _
      $region32: #{forward.1} parent=11 // pred_fallthru
        _
      // Predicated region
      $region33: #{forward.1} parent=11 // pred_check
        %p318 = pneg %p178
      $region34: #{forward.1} parent=11 // pred_check_branch
        %320 = sbr.rel (%p318) target = $region36
      $region35: #{forward.1} parent=11 // pred_region
        _
      $region36: #{forward.1} parent=11 // pred_fallthru
        _
      // Predicated region
      $region37: #{forward.1} parent=11 // pred_check
        %p321 = pneg %p199
      $region38: #{forward.1} parent=11 // pred_check_branch
        %323 = sbr.rel (%p321) target = $region40
      $region39: #{forward.1} parent=11 // pred_region
        _
      $region40: #{forward.1} parent=11 // pred_fallthru
        _
      // Predicated region
      $region41: #{forward.1} parent=11 // pred_check
        %p324 = pneg %p220
      $region42: #{forward.1} parent=11 // pred_check_branch
        %326 = sbr.rel (%p324) target = $region44
      $region43: #{forward.1} parent=11 // pred_region
        _
      $region44: #{forward.1} parent=11 // pred_fallthru
        _
      // Predicated region
      $region45: #{forward.1} parent=11 // pred_check
        %p327 = pneg %p241
      $region46: #{forward.1} parent=11 // pred_check_branch
        %329 = sbr.rel (%p327) target = $region48
      $region47: #{forward.1} parent=11 // pred_region
        _
      $region48: #{forward.1} parent=11 // pred_fallthru
        _
      // Predicated region
      $region49: #{forward.1} parent=11 // pred_check
        %p330 = pneg %p262
      $region50: #{forward.1} parent=11 // pred_check_branch
        %332 = sbr.rel (%p330) target = $region52
      $region51: #{forward.1} parent=11 // pred_region
        _
      $region52: #{forward.1} parent=11 // pred_fallthru
        _
    $region12: #{forward.1} parent=5 // pred_fallthru
      _
    %p333 = scmp.lt.s32.totalorder %s24, 4
    // Predicated region
    $region53: #{forward.1} parent=5 // pred_check
      %p334 = pneg %p333
    $region54: #{forward.1} parent=5 // pred_check_branch
      %336 = sbr.rel (%p334) target = $region56
    $region55: #{forward.1} parent=5 // pred_region
      // Predicated region
      $region57: #{forward.1} parent=55 // pred_check
        %p337 = pneg %p46
      $region58: #{forward.1} parent=55 // pred_check_branch
        %339 = sbr.rel (%p337) target = $region60
      $region59: #{forward.1} parent=55 // pred_region
        %s340 = sadd.s32 %s24, 1
        %p341 = scmp.lt.s32.totalorder %s340, 4
        %s342 = scalar_select %p341, %s340, 4
        %s343 = smul.addr %s342, 8
        %s344 = scalar_lea.vmem %s1, %s343
        %s345 = sadd.s32 %s24, 1
      $region60: #{forward.1} parent=55 // pred_fallthru
        _
    $region56: #{forward.1} parent=5 // pred_fallthru
      _
    %p346 = scmp.le.s32.totalorder 1, %s24
    %p347 = scmp.lt.s32.totalorder %s24, 5
    %p348 = pnand %p346, %p347
    %p349 = pneg %p348
    // Predicated region
    $region61: #{forward.1} parent=5 // pred_check
      _
    $region62: #{forward.1} parent=5 // pred_check_branch
      %351 = sbr.rel (%p348) target = $region64
    $region63: #{forward.1} parent=5 // pred_region
      %s352 = ssub.s32 %s24, 1
      %s353 = sadd.s32 %s29, 1
      %p354 = scmp.lt.s32.totalorder %s353, 4
      %s355 = scalar_select %p354, %s353, 4
      %s356 = smul.addr %s355, 8
      %s357 = scalar_lea.vmem %s1, %s356
      %p358 = pneg %p52
      %p359 = pneg %p49
      %p360 = pneg %p73
      %p361 = pneg %p70
      %p362 = pneg %p94
      %p363 = pneg %p91
      %p364 = pneg %p115
      %p365 = pneg %p112
      %p366 = pneg %p136
      %p367 = pneg %p133
      %p368 = pneg %p157
      %p369 = pneg %p154
      %p370 = pneg %p178
      %p371 = pneg %p175
      %p372 = pneg %p199
      %p373 = pneg %p196
      %p374 = pneg %p220
      %p375 = pneg %p217
      %p376 = pneg %p241
      %p377 = pneg %p238
      %p378 = pneg %p262
      %p379 = pneg %p259
      %p380 = pneg %p288
      %p381 = pneg %p285
      %p382 = scmp.lt.s32.totalorder %s29, 3
      %s383 = scalar_select %p382, %s29, 3
      %s384 = smul.addr %s383, 8
      %s385 = scalar_lea.vmem %s12, %s384
      %s386 = sadd.s32 %s29, 1
      %p387 = scmp.lt.s32.totalorder %s386, 4
      %s388 = scalar_select %p387, %s386, 4
      %s389 = smul.addr %s388, 8
      %s390 = scalar_lea.vmem %s1, %s389
      %s391 = sadd.s32 %s29, 1
      %p392 = scmp.lt.s32.totalorder %s29, 3
      %s393 = scalar_select %p392, %s29, 3
      %s394 = smul.addr %s393, 8
      %s395 = scalar_lea.vmem %s12, %s394
      %p396 = scmp.eq.s32.totalorder %s29, 0
      // Predicated region
      $region65: #{forward.1} parent=63 // pred_check
        %p397 = pneg %p396
      $region66: #{forward.1} parent=63 // pred_check_branch
        %399 = sbr.rel (%p397) target = $region68
      $region67: #{forward.1} parent=63 // pred_region
        %vm400 = vcmask 64512
        %401 = vst.msk [vmem:[#allocation2] sm:$0xff] %vm400, 0.0
        %vm402 = vcmask 130048
        %403 = vst.msk [vmem:[#allocation3] sm:$0xff] %vm402, 0.0
        %404 = vst.msk [vmem:[#allocation3 + $0x8] sm:$0xff] %vm402, 0.0
      $region68: #{forward.1} parent=63 // pred_fallthru
        _
      %v405 = vld [vmem:[#allocation2] sm:$0xff]
      %v406 = vld [vmem:[#allocation3] sm:$0xff]
      %v407 = vld [vmem:[%s2] sm:$0xff]
      %v408 = vld [vmem:[%s3] sm:$0xff]
      %v409 = vld [vmem:[%s3 + $0x8] sm:$0xff]
      %v410 = vld [vmem:[%s4] sm:$0x1]
      %v411 = vld [vmem:[%s5] sm:$0x1]
      %v413 = vlaneseq
      %v414 = vshrl.u32 %v413, 7
      %v415 = vsub.s32 0, %v414
      %v416 = vrot.slane %v410, %v415
      %vm418 = vcmask 64512
      %v420 = vsel %vm418, %v405, 0
      %422 = vmatprep.subr.mxu0 0.0
      %423 = vmatpush1.msra.mxu0 %v407
      %424 = vmatprep.subr.mxu0 0.0
      %425 = vmatpush1.msra.mxu0 0.0
      %426 = vmatprep.subr.mxu0 0.0
      %427 = vmatpush1.msra.mxu0 0.0
      %428 = vmatprep.subr.mxu0 0.0
      %429 = vmatpush1.msra.mxu0 0.0
      %430 = vmatprep.subr.mxu0 0.0
      %431 = vmatpush1.msra.mxu0 0.0
      %432 = vmatprep.subr.mxu0 0.0
      %433 = vmatpush1.msra.mxu0 0.0
      %434 = vmatprep.subr.mxu0 0.0
      %435 = vmatpush1.msra.mxu0 0.0
      %436 = vmatprep.subr.mxu0 0.0
      %437 = vmatpush1.msra.mxu0 0.0
      %438 = vmatprep.subr.mxu0 0.0
      %439 = vmatpush1.msra.mxu0 0.0
      %440 = vmatprep.subr.mxu0 0.0
      %441 = vmatpush1.msra.mxu0 0.0
      %442 = vmatprep.subr.mxu0 0.0
      %443 = vmatpush1.msra.mxu0 0.0
      %444 = vmatprep.subr.mxu0 0.0
      %445 = vmatpush1.msra.mxu0 0.0
      %446 = vmatprep.subr.mxu0 0.0
      %447 = vmatpush1.msra.mxu0 0.0
      %448 = vmatprep.subr.mxu0 0.0
      %449 = vmatpush1.msra.mxu0 0.0
      %450 = vmatprep.subr.mxu0 0.0
      %451 = vmatpush1.msra.mxu0 0.0
      %452 = vmatprep.subr.mxu0 0.0
      %453 = vmatpush1.msra.mxu0 0.0
      %454 = vmatprep.subr.mxu0 0.0
      %455 = vmatpush1.msra.mxu0 0.0
      %456 = vmatprep.subr.mxu0 0.0
      %457 = vmatpush1.msra.mxu0 0.0
      %458 = vmatprep.subr.mxu0 0.0
      %459 = vmatpush1.msra.mxu0 0.0
      %460 = vmatprep.subr.mxu0 0.0
      %461 = vmatpush1.msra.mxu0 0.0
      %462 = vmatprep.subr.mxu0 0.0
      %463 = vmatpush1.msra.mxu0 0.0
      %464 = vmatprep.subr.mxu0 0.0
      %465 = vmatpush1.msra.mxu0 0.0
      %466 = vmatprep.subr.mxu0 0.0
      %467 = vmatpush1.msra.mxu0 0.0
      %468 = vmatprep.subr.mxu0 0.0
      %469 = vmatpush1.msra.mxu0 0.0
      %470 = vmatprep.subr.mxu0 0.0
      %471 = vmatpush1.msra.mxu0 0.0
      %472 = vmatprep.subr.mxu0 0.0
      %473 = vmatpush1.msra.mxu0 0.0
      %474 = vmatprep.subr.mxu0 0.0
      %475 = vmatpush1.msra.mxu0 0.0
      %476 = vmatprep.subr.mxu0 0.0
      %477 = vmatpush1.msra.mxu0 0.0
      %478 = vmatprep.subr.mxu0 0.0
      %479 = vmatpush1.msra.mxu0 0.0
      %480 = vmatprep.subr.mxu0 0.0
      %481 = vmatpush1.msra.mxu0 0.0
      %482 = vmatprep.subr.mxu0 0.0
      %483 = vmatpush1.msra.mxu0 0.0
      %484 = vmatprep.subr.mxu0 0.0
      %485 = vmatpush1.msra.mxu0 0.0
      %486 = vmatprep.mubr.f32.mxu0 0.0
      %487 = vmatmul.mubr.f32.gmra.mrb[0].mxu0 %v420
      %v488 = vpop.f32.mrb[0].mxu0
      %v489 = vadd.f32 %v416, %v488
      %v490 = vpop.f32.mrb[0].mxu0
      %491 = vdwg.mxu0
      %v493 = vlaneseq
      %v494 = vshrl.u32 %v493, 7
      %v495 = vsub.s32 0, %v494
      %v496 = vrot.slane %v411, %v495
      %vm498 = vcmask 130048
      %v500 = vsel %vm498, %v406, 0
      %502 = vmatprep.subr.mxu0 0.0
      %503 = vmatpush1.msra.mxu0 %v408
      %504 = vmatprep.subr.mxu0 0.0
      %505 = vmatpush1.msra.mxu0 %v409
      %506 = vmatprep.subr.mxu0 0.0
      %507 = vmatpush1.msra.mxu0 0.0
      %508 = vmatprep.subr.mxu0 0.0
      %509 = vmatpush1.msra.mxu0 0.0
      %510 = vmatprep.subr.mxu0 0.0
      %511 = vmatpush1.msra.mxu0 0.0
      %512 = vmatprep.subr.mxu0 0.0
      %513 = vmatpush1.msra.mxu0 0.0
      %514 = vmatprep.subr.mxu0 0.0
      %515 = vmatpush1.msra.mxu0 0.0
      %516 = vmatprep.subr.mxu0 0.0
      %517 = vmatpush1.msra.mxu0 0.0
      %518 = vmatprep.subr.mxu0 0.0
      %519 = vmatpush1.msra.mxu0 0.0
      %520 = vmatprep.subr.mxu0 0.0
      %521 = vmatpush1.msra.mxu0 0.0
      %522 = vmatprep.subr.mxu0 0.0
      %523 = vmatpush1.msra.mxu0 0.0
      %524 = vmatprep.subr.mxu0 0.0
      %525 = vmatpush1.msra.mxu0 0.0
      %526 = vmatprep.subr.mxu0 0.0
      %527 = vmatpush1.msra.mxu0 0.0
      %528 = vmatprep.subr.mxu0 0.0
      %529 = vmatpush1.msra.mxu0 0.0
      %530 = vmatprep.subr.mxu0 0.0
      %531 = vmatpush1.msra.mxu0 0.0
      %532 = vmatprep.subr.mxu0 0.0
      %533 = vmatpush1.msra.mxu0 0.0
      %534 = vmatprep.subr.mxu0 0.0
      %535 = vmatpush1.msra.mxu0 0.0
      %536 = vmatprep.subr.mxu0 0.0
      %537 = vmatpush1.msra.mxu0 0.0
      %538 = vmatprep.subr.mxu0 0.0
      %539 = vmatpush1.msra.mxu0 0.0
      %540 = vmatprep.subr.mxu0 0.0
      %541 = vmatpush1.msra.mxu0 0.0
      %542 = vmatprep.subr.mxu0 0.0
      %543 = vmatpush1.msra.mxu0 0.0
      %544 = vmatprep.subr.mxu0 0.0
      %545 = vmatpush1.msra.mxu0 0.0
      %546 = vmatprep.subr.mxu0 0.0
      %547 = vmatpush1.msra.mxu0 0.0
      %548 = vmatprep.subr.mxu0 0.0
      %549 = vmatpush1.msra.mxu0 0.0
      %550 = vmatprep.subr.mxu0 0.0
      %551 = vmatpush1.msra.mxu0 0.0
      %552 = vmatprep.subr.mxu0 0.0
      %553 = vmatpush1.msra.mxu0 0.0
      %554 = vmatprep.subr.mxu0 0.0
      %555 = vmatpush1.msra.mxu0 0.0
      %556 = vmatprep.subr.mxu0 0.0
      %557 = vmatpush1.msra.mxu0 0.0
      %558 = vmatprep.subr.mxu0 0.0
      %559 = vmatpush1.msra.mxu0 0.0
      %560 = vmatprep.subr.mxu0 0.0
      %561 = vmatpush1.msra.mxu0 0.0
      %562 = vmatprep.subr.mxu0 0.0
      %563 = vmatpush1.msra.mxu0 0.0
      %564 = vmatprep.subr.mxu0 0.0
      %565 = vmatpush1.msra.mxu0 0.0
      %566 = vmatprep.mubr.f32.mxu0 0.0
      %567 = vmatmul.mubr.f32.gmra.mrb[0].mxu0 %v500
      %v568 = vpop.f32.mrb[0].mxu0
      %v569 = vadd.f32 %v496, %v568
      %v570 = vpop.f32.mrb[0].mxu0
      %571 = vdwg.mxu0
      %v572 = vadd.f32 %v489, %v569
      %v573 = vxor.u32 %v572, 2147483648
      %v574 = vmul.f32 %v573, 1.442695
      %v575 = vpow.pop %v574
      %v576 = vadd.f32 %v575, 1.0
      %v577 = vrcp.pop %v576
      %v578 = vmul.f32 1.0, %v577
      %580 = vrot.lane.b32.xlu0 %v569, 96
      %v581 = vpop.permute.xlu0 %580
      %v583 = vmul.f32 %v578, %v581
      %585 = vrot.lane.b32.xlu0 %v583, 32
      %v586 = vpop.permute.xlu0 %585
      %v588 = vadd.f32 %v489, %v586
      %v589 = vtanh.pop %v588
      %v590 = vsub.f32 1.0, %v578
      %592 = vrot.lane.b32.xlu0 %v589, 112
      %v593 = vpop.permute.xlu0 %592
      %v595 = vmul.f32 %v590, %v593
      %596 = vrot.lane.b32.xlu0 %v406, 16
      %v597 = vpop.permute.xlu0 %596
      %v599 = vmul.f32 %v578, %v597
      %v600 = vadd.f32 %v595, %v599
      %602 = vrot.lane.b32.xlu0 %v600, 112
      %v603 = vpop.permute.xlu0 %602
      %605 = vst.msk [vmem:[#allocation3] sm:$0xff] %vm498, %v603
      %s606 = scalar_lea.vmem [#allocation3], 8
      %v607 = vld [vmem:[%s606] sm:$0xff]
      %v608 = vld [vmem:[%s6] sm:$0xff]
      %v609 = vld [vmem:[%s6 + $0x8] sm:$0xff]
      %v610 = vld [vmem:[%s7] sm:$0xff]
      %v611 = vld [vmem:[%s7 + $0x8] sm:$0xff]
      %v612 = vld [vmem:[%s8] sm:$0x1]
      %v613 = vld [vmem:[%s9] sm:$0x1]
      %v615 = vlaneseq
      %v616 = vshrl.u32 %v615, 7
      %v617 = vsub.s32 0, %v616
      %v618 = vrot.slane %v612, %v617
      %v620 = vsel %vm498, %v603, 0
      %622 = vmatprep.subr.mxu0 0.0
      %623 = vmatpush1.msra.mxu0 %v608
      %624 = vmatprep.subr.mxu0 0.0
      %625 = vmatpush1.msra.mxu0 %v609
      %626 = vmatprep.subr.mxu0 0.0
      %627 = vmatpush1.msra.mxu0 0.0
      %628 = vmatprep.subr.mxu0 0.0
      %629 = vmatpush1.msra.mxu0 0.0
      %630 = vmatprep.subr.mxu0 0.0
      %631 = vmatpush1.msra.mxu0 0.0
      %632 = vmatprep.subr.mxu0 0.0
      %633 = vmatpush1.msra.mxu0 0.0
      %634 = vmatprep.subr.mxu0 0.0
      %635 = vmatpush1.msra.mxu0 0.0
      %636 = vmatprep.subr.mxu0 0.0
      %637 = vmatpush1.msra.mxu0 0.0
      %638 = vmatprep.subr.mxu0 0.0
      %639 = vmatpush1.msra.mxu0 0.0
      %640 = vmatprep.subr.mxu0 0.0
      %641 = vmatpush1.msra.mxu0 0.0
      %642 = vmatprep.subr.mxu0 0.0
      %643 = vmatpush1.msra.mxu0 0.0
      %644 = vmatprep.subr.mxu0 0.0
      %645 = vmatpush1.msra.mxu0 0.0
      %646 = vmatprep.subr.mxu0 0.0
      %647 = vmatpush1.msra.mxu0 0.0
      %648 = vmatprep.subr.mxu0 0.0
      %649 = vmatpush1.msra.mxu0 0.0
      %650 = vmatprep.subr.mxu0 0.0
      %651 = vmatpush1.msra.mxu0 0.0
      %652 = vmatprep.subr.mxu0 0.0
      %653 = vmatpush1.msra.mxu0 0.0
      %654 = vmatprep.subr.mxu0 0.0
      %655 = vmatpush1.msra.mxu0 0.0
      %656 = vmatprep.subr.mxu0 0.0
      %657 = vmatpush1.msra.mxu0 0.0
      %658 = vmatprep.subr.mxu0 0.0
      %659 = vmatpush1.msra.mxu0 0.0
      %660 = vmatprep.subr.mxu0 0.0
      %661 = vmatpush1.msra.mxu0 0.0
      %662 = vmatprep.subr.mxu0 0.0
      %663 = vmatpush1.msra.mxu0 0.0
      %664 = vmatprep.subr.mxu0 0.0
      %665 = vmatpush1.msra.mxu0 0.0
      %666 = vmatprep.subr.mxu0 0.0
      %667 = vmatpush1.msra.mxu0 0.0
      %668 = vmatprep.subr.mxu0 0.0
      %669 = vmatpush1.msra.mxu0 0.0
      %670 = vmatprep.subr.mxu0 0.0
      %671 = vmatpush1.msra.mxu0 0.0
      %672 = vmatprep.subr.mxu0 0.0
      %673 = vmatpush1.msra.mxu0 0.0
      %674 = vmatprep.subr.mxu0 0.0
      %675 = vmatpush1.msra.mxu0 0.0
      %676 = vmatprep.subr.mxu0 0.0
      %677 = vmatpush1.msra.mxu0 0.0
      %678 = vmatprep.subr.mxu0 0.0
      %679 = vmatpush1.msra.mxu0 0.0
      %680 = vmatprep.subr.mxu0 0.0
      %681 = vmatpush1.msra.mxu0 0.0
      %682 = vmatprep.subr.mxu0 0.0
      %683 = vmatpush1.msra.mxu0 0.0
      %684 = vmatprep.subr.mxu0 0.0
      %685 = vmatpush1.msra.mxu0 0.0
      %686 = vmatprep.mubr.f32.mxu0 0.0
      %687 = vmatmul.mubr.f32.gmra.mrb[0].mxu0 %v620
      %v688 = vpop.f32.mrb[0].mxu0
      %v689 = vadd.f32 %v618, %v688
      %v690 = vpop.f32.mrb[0].mxu0
      %691 = vdwg.mxu0
      %v693 = vlaneseq
      %v694 = vshrl.u32 %v693, 7
      %v695 = vsub.s32 0, %v694
      %v696 = vrot.slane %v613, %v695
      %v699 = vsel %vm498, %v607, 0
      %701 = vmatprep.subr.mxu0 0.0
      %702 = vmatpush1.msra.mxu0 %v610
      %703 = vmatprep.subr.mxu0 0.0
      %704 = vmatpush1.msra.mxu0 %v611
      %705 = vmatprep.subr.mxu0 0.0
      %706 = vmatpush1.msra.mxu0 0.0
      %707 = vmatprep.subr.mxu0 0.0
      %708 = vmatpush1.msra.mxu0 0.0
      %709 = vmatprep.subr.mxu0 0.0
      %710 = vmatpush1.msra.mxu0 0.0
      %711 = vmatprep.subr.mxu0 0.0
      %712 = vmatpush1.msra.mxu0 0.0
      %713 = vmatprep.subr.mxu0 0.0
      %714 = vmatpush1.msra.mxu0 0.0
      %715 = vmatprep.subr.mxu0 0.0
      %716 = vmatpush1.msra.mxu0 0.0
      %717 = vmatprep.subr.mxu0 0.0
      %718 = vmatpush1.msra.mxu0 0.0
      %719 = vmatprep.subr.mxu0 0.0
      %720 = vmatpush1.msra.mxu0 0.0
      %721 = vmatprep.subr.mxu0 0.0
      %722 = vmatpush1.msra.mxu0 0.0
      %723 = vmatprep.subr.mxu0 0.0
      %724 = vmatpush1.msra.mxu0 0.0
      %725 = vmatprep.subr.mxu0 0.0
      %726 = vmatpush1.msra.mxu0 0.0
      %727 = vmatprep.subr.mxu0 0.0
      %728 = vmatpush1.msra.mxu0 0.0
      %729 = vmatprep.subr.mxu0 0.0
      %730 = vmatpush1.msra.mxu0 0.0
      %731 = vmatprep.subr.mxu0 0.0
      %732 = vmatpush1.msra.mxu0 0.0
      %733 = vmatprep.subr.mxu0 0.0
      %734 = vmatpush1.msra.mxu0 0.0
      %735 = vmatprep.subr.mxu0 0.0
      %736 = vmatpush1.msra.mxu0 0.0
      %737 = vmatprep.subr.mxu0 0.0
      %738 = vmatpush1.msra.mxu0 0.0
      %739 = vmatprep.subr.mxu0 0.0
      %740 = vmatpush1.msra.mxu0 0.0
      %741 = vmatprep.subr.mxu0 0.0
      %742 = vmatpush1.msra.mxu0 0.0
      %743 = vmatprep.subr.mxu0 0.0
      %744 = vmatpush1.msra.mxu0 0.0
      %745 = vmatprep.subr.mxu0 0.0
      %746 = vmatpush1.msra.mxu0 0.0
      %747 = vmatprep.subr.mxu0 0.0
      %748 = vmatpush1.msra.mxu0 0.0
      %749 = vmatprep.subr.mxu0 0.0
      %750 = vmatpush1.msra.mxu0 0.0
      %751 = vmatprep.subr.mxu0 0.0
      %752 = vmatpush1.msra.mxu0 0.0
      %753 = vmatprep.subr.mxu0 0.0
      %754 = vmatpush1.msra.mxu0 0.0
      %755 = vmatprep.subr.mxu0 0.0
      %756 = vmatpush1.msra.mxu0 0.0
      %757 = vmatprep.subr.mxu0 0.0
      %758 = vmatpush1.msra.mxu0 0.0
      %759 = vmatprep.subr.mxu0 0.0
      %760 = vmatpush1.msra.mxu0 0.0
      %761 = vmatprep.subr.mxu0 0.0
      %762 = vmatpush1.msra.mxu0 0.0
      %763 = vmatprep.subr.mxu0 0.0
      %764 = vmatpush1.msra.mxu0 0.0
      %765 = vmatprep.mubr.f32.mxu0 0.0
      %766 = vmatmul.mubr.f32.gmra.mrb[0].mxu0 %v699
      %v767 = vpop.f32.mrb[0].mxu0
      %v768 = vadd.f32 %v696, %v767
      %v769 = vpop.f32.mrb[0].mxu0
      %770 = vdwg.mxu0
      %v771 = vadd.f32 %v689, %v768
      %v772 = vxor.u32 %v771, 2147483648
      %v773 = vmul.f32 %v772, 1.442695
      %v774 = vpow.pop %v773
      %v775 = vadd.f32 %v774, 1.0
      %v776 = vrcp.pop %v775
      %v777 = vmul.f32 1.0, %v776
      %779 = vrot.lane.b32.xlu0 %v768, 96
      %v780 = vpop.permute.xlu0 %779
      %v782 = vmul.f32 %v777, %v780
      %784 = vrot.lane.b32.xlu0 %v782, 32
      %v785 = vpop.permute.xlu0 %784
      %v787 = vadd.f32 %v689, %v785
      %v788 = vtanh.pop %v787
      %v789 = vsub.f32 1.0, %v777
      %791 = vrot.lane.b32.xlu0 %v788, 112
      %v792 = vpop.permute.xlu0 %791
      %v794 = vmul.f32 %v789, %v792
      %795 = vrot.lane.b32.xlu0 %v607, 16
      %v796 = vpop.permute.xlu0 %795
      %v798 = vmul.f32 %v777, %v796
      %v799 = vadd.f32 %v794, %v798
      %801 = vrot.lane.b32.xlu0 %v799, 112
      %v802 = vpop.permute.xlu0 %801
      %804 = vst.msk [vmem:[%s606] sm:$0xff] %vm498, %v802
      %v805 = vld [vmem:[%s10] sm:$0xff]
      %v806 = vld [vmem:[%s10 + $0x8] sm:$0xff]
      %v807 = vld [vmem:[%s11] sm:$0x1]
      %v809 = vlaneseq
      %v810 = vshrl.u32 %v809, 7
      %v811 = vsub.s32 0, %v810
      %v812 = vrot.slane %v807, %v811
      %v814 = vsel %vm498, %v802, 0
      %816 = vmatprep.subr.mxu0 0.0
      %817 = vmatpush1.msra.mxu0 %v805
      %818 = vmatprep.subr.mxu0 0.0
      %819 = vmatpush1.msra.mxu0 %v806
      %820 = vmatprep.subr.mxu0 0.0
      %821 = vmatpush1.msra.mxu0 0.0
      %822 = vmatprep.subr.mxu0 0.0
      %823 = vmatpush1.msra.mxu0 0.0
      %824 = vmatprep.subr.mxu0 0.0
      %825 = vmatpush1.msra.mxu0 0.0
      %826 = vmatprep.subr.mxu0 0.0
      %827 = vmatpush1.msra.mxu0 0.0
      %828 = vmatprep.subr.mxu0 0.0
      %829 = vmatpush1.msra.mxu0 0.0
      %830 = vmatprep.subr.mxu0 0.0
      %831 = vmatpush1.msra.mxu0 0.0
      %832 = vmatprep.subr.mxu0 0.0
      %833 = vmatpush1.msra.mxu0 0.0
      %834 = vmatprep.subr.mxu0 0.0
      %835 = vmatpush1.msra.mxu0 0.0
      %836 = vmatprep.subr.mxu0 0.0
      %837 = vmatpush1.msra.mxu0 0.0
      %838 = vmatprep.subr.mxu0 0.0
      %839 = vmatpush1.msra.mxu0 0.0
      %840 = vmatprep.subr.mxu0 0.0
      %841 = vmatpush1.msra.mxu0 0.0
      %842 = vmatprep.subr.mxu0 0.0
      %843 = vmatpush1.msra.mxu0 0.0
      %844 = vmatprep.subr.mxu0 0.0
      %845 = vmatpush1.msra.mxu0 0.0
      %846 = vmatprep.subr.mxu0 0.0
      %847 = vmatpush1.msra.mxu0 0.0
      %848 = vmatprep.subr.mxu0 0.0
      %849 = vmatpush1.msra.mxu0 0.0
      %850 = vmatprep.subr.mxu0 0.0
      %851 = vmatpush1.msra.mxu0 0.0
      %852 = vmatprep.subr.mxu0 0.0
      %853 = vmatpush1.msra.mxu0 0.0
      %854 = vmatprep.subr.mxu0 0.0
      %855 = vmatpush1.msra.mxu0 0.0
      %856 = vmatprep.subr.mxu0 0.0
      %857 = vmatpush1.msra.mxu0 0.0
      %858 = vmatprep.subr.mxu0 0.0
      %859 = vmatpush1.msra.mxu0 0.0
      %860 = vmatprep.subr.mxu0 0.0
      %861 = vmatpush1.msra.mxu0 0.0
      %862 = vmatprep.subr.mxu0 0.0
      %863 = vmatpush1.msra.mxu0 0.0
      %864 = vmatprep.subr.mxu0 0.0
      %865 = vmatpush1.msra.mxu0 0.0
      %866 = vmatprep.subr.mxu0 0.0
      %867 = vmatpush1.msra.mxu0 0.0
      %868 = vmatprep.subr.mxu0 0.0
      %869 = vmatpush1.msra.mxu0 0.0
      %870 = vmatprep.subr.mxu0 0.0
      %871 = vmatpush1.msra.mxu0 0.0
      %872 = vmatprep.subr.mxu0 0.0
      %873 = vmatpush1.msra.mxu0 0.0
      %874 = vmatprep.subr.mxu0 0.0
      %875 = vmatpush1.msra.mxu0 0.0
      %876 = vmatprep.subr.mxu0 0.0
      %877 = vmatpush1.msra.mxu0 0.0
      %878 = vmatprep.subr.mxu0 0.0
      %879 = vmatpush1.msra.mxu0 0.0
      %880 = vmatprep.mubr.f32.mxu0 0.0
      %881 = vmatmul.mubr.f32.gmra.mrb[0].mxu0 %v814
      %v882 = vpop.f32.mrb[0].mxu0
      %v883 = vadd.f32 %v812, %v882
      %v884 = vpop.f32.mrb[0].mxu0
      %885 = vdwg.mxu0
      %886 = vmax.xlane.f32.xlu0 %v883
      %v887 = vpop.xlane.xlu0 %886
      %v888 = vsub.f32 %v883, %v887
      %v889 = vmul.f32 %v888, 1.442695
      %v890 = vpow.pop %v889
      %891 = vadd.xlane.f32.xlu0 %v890
      %v892 = vpop.xlane.xlu0 %891
      %v893 = vlog2.pop %v892
      %v894 = vmul.f32 %v893, 0.6931472
      %v895 = vsub.f32 %v888, %v894
      %896 = vst [vmem:[%s395] sm:$0xff] %v895
      %897 = vmax.xlane.f32.xlu0 %v895
      %v898 = vpop.xlane.xlu0 %897
      %v899 = vlaneseq
      %v900 = vand.u32 %v899, 127
      %v901 = vcvt.s32.f32 %v900
      %vm902 = vcmp.ge.f32.partialorder %v895, %v898
      %v903 = vsel %vm902, %v901, 128.0
      %904 = vmin.xlane.f32.xlu0 %v903
      %v905 = vpop.xlane.xlu0 %904
      %s906 = sld [smem:[#allocation5 + %s29]]
      %p907 = scmp.gt.s32.totalorder %s906, 0
      %s908 = scalar_select %p907, 1, 0
      %s909 = scvt.s32.f32 %s908
      %v910 = vld [vmem:[%s390] sm:$0xff]
      %v911 = vstv %s909
      %v912 = vmul.f32 %v911, %v910
      %s913 = ssub.f32 1.0, %s909
      %v914 = vstv %s913
      %v915 = vmul.f32 %v914, %v905
      %v916 = vadd.f32 %v912, %v915
      %917 = vst.msk [vmem:[#allocation2] sm:$0xff] %vm418, %v916
      %p918 = scmp.lt.s32.totalorder %s29, 3
      %s919 = scalar_select %p918, %s29, 3
      %s920 = smul.addr %s919, 8
      %s921 = scalar_lea.vmem %s12, %s920
      // Predicated region
      $region69: #{forward.1} parent=63 // pred_check
        %p922 = pneg %p285
      $region70: #{forward.1} parent=63 // pred_check_branch
        %924 = sbr.rel (%p922) target = $region72
      $region71: #{forward.1} parent=63 // pred_region
        _
      $region72: #{forward.1} parent=63 // pred_fallthru
        _
    $region64: #{forward.1} parent=5 // pred_fallthru
      _
    %p925 = scmp.le.s32.totalorder 2, %s24
    // Predicated region
    $region73: #{forward.1} parent=5 // pred_check
      %p926 = pneg %p925
    $region74: #{forward.1} parent=5 // pred_check_branch
      %928 = sbr.rel (%p926) target = $region76
    $region75: #{forward.1} parent=5 // pred_region
      %s929 = ssub.s32 %s24, 2
      // Predicated region
      $region77: #{forward.1} parent=75 // pred_check
        %p930 = pneg %p291
      $region78: #{forward.1} parent=75 // pred_check_branch
        %932 = sbr.rel (%p930) target = $region80
      $region79: #{forward.1} parent=75 // pred_region
        %p933 = scmp.lt.s32.totalorder %s30, 3
        %s934 = scalar_select %p933, %s30, 3
        %s935 = smul.addr %s934, 8
        %s936 = scalar_lea.vmem %s12, %s935
      $region80: #{forward.1} parent=75 // pred_fallthru
        _
    $region76: #{forward.1} parent=5 // pred_fallthru
      _
  $region6: #{forward.1} parent=0 // loop_footer
    %s28 = sadd.s32 1, %s24
  $region7: #{forward.1} parent=0 // loop_footer_branch
    %23 = sbr.rel target = $region3
  $region8: #{forward.1} parent=0 // loop_exit
    _

</llo_original>
